<compile_context>
chip_gen: v5e
topology: v5e:2x2
jax: 0.10.0
libtpu: 0.0.40
codegen_flags: <defaults>
</compile_context>

<pallas_src>
from functools import partial

import jax
import jax.numpy as jnp
from jax.experimental import pallas as pl
from jax.experimental.pallas import tpu as pltpu


def _round_up(v: int, m: int) -> int:
    return (v + m - 1) // m * m


def _vmem_limit_bytes() -> int:
    """Generation-aware scoped-VMEM limit (v7x has 64 MiB, v5e/v6e 128 MiB)."""
    try:
        cap = pltpu.get_tpu_info().vmem_capacity_bytes
    except Exception:
        cap = 64 * 1024 * 1024
    # ~75% of physical VMEM, clamped to [32 MiB, 96 MiB]: ~48 MiB on v7x,
    # 96 MiB on v5e/v6e. Tiles below use only a few MiB, so this is headroom.
    return int(min(96 * 1024 * 1024, max(32 * 1024 * 1024, 0.75 * cap)))


def _xa_kernel(x_ref, wa_ref, xa_ref, acc_ref, *, alpha, compute_dtype):
    """xa = alpha * (x @ W_a), K-tiled reduction with f32 accumulator."""
    k = pl.program_id(1)

    @pl.when(k == 0)
    def _():
        acc_ref[...] = jnp.zeros_like(acc_ref)

    # Cast the x tile in-kernel (avoids a wrapper-side HBM cast pass over x).
    acc_ref[...] += jnp.dot(x_ref[...].astype(compute_dtype), wa_ref[...],
                            preferred_element_type=jnp.float32)

    @pl.when(k == pl.num_programs(1) - 1)
    def _():
        # alpha applied in f32 to the small (tm, r_pad) intermediate.
        xa_ref[...] = (alpha * acc_ref[...]).astype(xa_ref.dtype)


def _out_kernel(xa_ref, wb_ref, o_ref):
    """out = xa @ W_b; r_pad fits in one K pass, no reduction axis."""
    o_ref[...] = jnp.dot(xa_ref[...], wb_ref[...],
                         preferred_element_type=jnp.float32).astype(o_ref.dtype)


def lora_forward(x, w_a, w_b, alpha, *,
                 compute_dtype=jnp.bfloat16,
                 out_dtype=None,
                 tile_m=512, tile_n=2048, tile_k=1024):
    """alpha * (x @ w_a @ w_b) via two tiled, pipelined Pallas TPU kernels."""
    m, k_dim = x.shape
    k_dim2, rank = w_a.shape
    rank2, n = w_b.shape
    assert k_dim == k_dim2 and rank == rank2
    out_dtype = x.dtype if out_dtype is None else out_dtype

    # Tile sizes: batch tile multiple of 16 (bf16 sublane packing), lane-dense
    # (x128) K/N tiles, rank padded to 128 (do NOT pad further).
    tm = min(_round_up(tile_m, 16), _round_up(m, 16))
    tn = min(_round_up(tile_n, 128), _round_up(n, 128))
    tk = min(_round_up(tile_k, 128), _round_up(k_dim, 128))
    r_pad = _round_up(rank, 128)

    mp = _round_up(m, tm)
    np_ = _round_up(n, tn)
    kp = _round_up(k_dim, tk)

    # Zero padding is exact: padded K cols of x hit zero rows of W_a, padded
    # rank cols/rows are zero, padded N cols are sliced off.  x is only padded
    # when actually needed (no extra HBM pass in the aligned common case) and
    # keeps its native dtype.
    xp = x if (mp == m and kp == k_dim) else jnp.pad(
        x, ((0, mp - m), (0, kp - k_dim)))
    wap = jnp.pad(w_a.astype(compute_dtype),
                  ((0, kp - k_dim), (0, r_pad - rank)))
    wbp = jnp.pad(w_b.astype(compute_dtype),
                  ((0, r_pad - rank), (0, np_ - n)))

    vmem_limit = _vmem_limit_bytes()
    cd_bytes = jnp.dtype(compute_dtype).itemsize
    out_bytes = jnp.dtype(out_dtype).itemsize

    # --- Pass 1: xa = alpha * (x @ W_a), computed exactly once. ---
    # TODO(synk): alpha is baked in as a static Python float (matches the
    # module, where alpha is a plain attribute); accept it via SMEM if it ever
    # needs to be a traced runtime value.
    xa = pl.pallas_call(
        partial(_xa_kernel, alpha=float(alpha), compute_dtype=compute_dtype),
        out_shape=jax.ShapeDtypeStruct((mp, r_pad), compute_dtype),
        grid_spec=pltpu.PrefetchScalarGridSpec(
            num_scalar_prefetch=0,
            grid=(mp // tm, kp // tk),
            in_specs=[
                # x streams over (batch, K) tiles — read once.
                pl.BlockSpec((tm, tk), lambda i, k: (i, k)),
                # W_a streams along K.
                pl.BlockSpec((tk, r_pad), lambda i, k: (k, 0)),
            ],
            # Output tile constant across k -> resident accumulator target.
            out_specs=pl.BlockSpec((tm, r_pad), lambda i, k: (i, 0)),
            scratch_shapes=[pltpu.VMEM((tm, r_pad), jnp.float32)],
        ),
        compiler_params=pltpu.CompilerParams(
            dimension_semantics=("parallel", "arbitrary"),
            vmem_limit_bytes=vmem_limit,
        ),
        cost_estimate=pl.CostEstimate(
            flops=2 * mp * kp * r_pad,
            transcendentals=0,
            bytes_accessed=(xp.size * xp.dtype.itemsize
                            + wap.size * cd_bytes
                            + mp * r_pad * cd_bytes)),
    )(xp, wap)

    # --- Pass 2: out = xa @ W_b, fully parallel (i, j) grid. ---
    out_padded = pl.pallas_call(
        _out_kernel,
        out_shape=jax.ShapeDtypeStruct((mp, np_), out_dtype),
        grid_spec=pltpu.PrefetchScalarGridSpec(
            num_scalar_prefetch=0,
            grid=(mp // tm, np_ // tn),
            in_specs=[
                # xa resident per batch tile (tiny: tm x 128).
                pl.BlockSpec((tm, r_pad), lambda i, j: (i, 0)),
                # W_b streams over out tiles.
                pl.BlockSpec((r_pad, tn), lambda i, j: (0, j)),
            ],
            out_specs=pl.BlockSpec((tm, tn), lambda i, j: (i, j)),
        ),
        compiler_params=pltpu.CompilerParams(
            # Both axes independent -> shardable across v7x's two TensorCores.
            dimension_semantics=("parallel", "parallel"),
            vmem_limit_bytes=vmem_limit,
        ),
        cost_estimate=pl.CostEstimate(
            flops=2 * mp * r_pad * np_,
            transcendentals=0,
            bytes_accessed=(mp * r_pad * cd_bytes
                            + wbp.size * cd_bytes
                            + mp * np_ * out_bytes)),
    )(xa, wbp)

    if mp == m and np_ == n:
        return out_padded
    return out_padded[:m, :n]


def _lora_reference(x, w_a, w_b, alpha, compute_dtype):
    """Reference at the kernel's compute precision (f32 accumulation)."""
    f32 = jnp.float32
    xc = x.astype(compute_dtype).astype(f32)
    wac = w_a.astype(compute_dtype).astype(f32)
    wbc = w_b.astype(compute_dtype).astype(f32)
    xa = (alpha * (xc @ wac)).astype(compute_dtype).astype(f32)
    return (xa @ wbc).astype(x.dtype)


if __name__ == "__main__":
    # Small shapes consistent with the module: batch=8, in_dim=32, rank=4, out_dim=32
    batch, in_dim, rank, out_dim = 8, 32, 4, 32
    alpha = 2.0

    key = jax.random.PRNGKey(0)
    kx, kwa, kwb, kx2, kwa2, kwb2 = jax.random.split(key, 6)

    # Deterministic params mirroring LoRALayer.__init__:
    #   W_a = randn(in_dim, rank) / sqrt(rank),  W_b = zeros(rank, out_dim)
    x = jax.random.normal(kx, (batch, in_dim), dtype=jnp.float32)
    std_dev = 1.0 / jnp.sqrt(jnp.float32(rank))
    w_a = jax.random.normal(kwa, (in_dim, rank), dtype=jnp.float32) * std_dev
    w_b = jnp.zeros((rank, out_dim), dtype=jnp.float32)

    # 1) Faithful init (W_b == 0): output must be (exactly) zero.
    out = lora_forward(x, w_a, w_b, alpha)
    jax.block_until_ready(out)
    assert out.shape == (batch, out_dim)
    assert jnp.allclose(out, alpha * (x @ w_a @ w_b), atol=1e-6)

    # 2) Non-zero W_b, default bf16 compute path (unaligned dims -> padding).
    w_b_nz = jax.random.normal(kwb, (rank, out_dim), dtype=jnp.float32) * 0.1
    out_nz = lora_forward(x, w_a, w_b_nz, alpha)
    jax.block_until_ready(out_nz)
    ref_bf16 = _lora_reference(x, w_a, w_b_nz, alpha, jnp.bfloat16)
    assert jnp.allclose(out_nz, ref_bf16, atol=1e-2, rtol=1e-2)
    ref_f32 = alpha * (x @ w_a @ w_b_nz)
    assert jnp.allclose(out_nz, ref_f32, atol=5e-2, rtol=5e-2)

    # 2b) out_dtype=bf16 option (halves output writeback for large n).
    out_bf = lora_forward(x, w_a, w_b_nz, alpha, out_dtype=jnp.bfloat16)
    jax.block_until_ready(out_bf)
    assert out_bf.dtype == jnp.bfloat16
    assert jnp.allclose(out_bf.astype(jnp.float32), ref_bf16,
                        atol=3e-2, rtol=3e-2)

    # 3) Force multi-tile grids on both passes with small tiles to exercise
    #    the K-accumulator / streaming / parallel-axis logic end to end.
    b2, k2, r2, n2 = 32, 256, 8, 256
    x2 = jax.random.normal(kx2, (b2, k2), dtype=jnp.float32)
    w_a2 = jax.random.normal(kwa2, (k2, r2), dtype=jnp.float32) / jnp.sqrt(
        jnp.float32(r2))
    w_b2 = jax.random.normal(kwb2, (r2, n2), dtype=jnp.float32) * 0.05
    out2 = lora_forward(x2, w_a2, w_b2, alpha,
                        tile_m=16, tile_n=128, tile_k=128)
    jax.block_until_ready(out2)
    ref2 = _lora_reference(x2, w_a2, w_b2, alpha, jnp.bfloat16)
    assert out2.shape == (b2, n2)
    assert jnp.allclose(out2, ref2, atol=1e-2, rtol=1e-2)

    print("KERNEL_OK")
</pallas_src>

<mosaic_0001>
module attributes {stable_mosaic.version = 11 : i64} {
  func.func @_xa_kernel(%arg0: i32, %arg1: i32, %arg2: memref<16x128xf32, #tpu.memory_space<vmem>>, %arg3: memref<128x128xbf16, #tpu.memory_space<vmem>>, %arg4: memref<16x128xbf16, #tpu.memory_space<vmem>>, %arg5: memref<16x128xf32, #tpu.memory_space<vmem>>) attributes {dimension_semantics = [#tpu.dimension_semantics<parallel>, #tpu.dimension_semantics<arbitrary>], iteration_bounds = array<i64: 1, 1>, scalar_prefetch = 0 : i64, scratch_operands = 1 : i64, tpu.core_type = #tpu.core_type<tc>, window_params = [{transform_indices = @transform_0, window_bounds = array<i64: 16, 128>}, {transform_indices = @transform_1, window_bounds = array<i64: 128, 128>}, {transform_indices = @transform_2, window_bounds = array<i64: 16, 128>}]} {
    %c0_i32 = arith.constant 0 : i32
    %0 = arith.cmpi eq, %arg1, %c0_i32 : i32
    %1 = arith.extui %0 : i1 to i32
    %c0_i32_0 = arith.constant 0 : i32
    %2 = arith.cmpi ne, %1, %c0_i32_0 : i32
    scf.if %2 {
      %cst_10 = arith.constant 0.000000e+00 : f32
      %13 = vector.broadcast %cst_10 : f32 to vector<16x128xf32>
      %c0_11 = arith.constant 0 : index
      %c0_12 = arith.constant 0 : index
      %14 = vector.load %arg5[%c0_11, %c0_12] : memref<16x128xf32, #tpu.memory_space<vmem>>, vector<16x128xf32>
      tpu.vector_store %arg5[%c0_11, %c0_12], %13 {strides = array<i32>} : memref<16x128xf32, #tpu.memory_space<vmem>>, vector<16x128xf32>,
    } else {
    }
    %c0 = arith.constant 0 : index
    %c0_1 = arith.constant 0 : index
    %3 = vector.load %arg5[%c0, %c0_1] : memref<16x128xf32, #tpu.memory_space<vmem>>, vector<16x128xf32>
    %c0_2 = arith.constant 0 : index
    %c0_3 = arith.constant 0 : index
    %4 = vector.load %arg2[%c0_2, %c0_3] : memref<16x128xf32, #tpu.memory_space<vmem>>, vector<16x128xf32>
    %5 = arith.truncf %4 : vector<16x128xf32> to vector<16x128xbf16>
    %c0_4 = arith.constant 0 : index
    %c0_5 = arith.constant 0 : index
    %6 = vector.load %arg3[%c0_4, %c0_5] : memref<128x128xbf16, #tpu.memory_space<vmem>>, vector<128x128xbf16>
    %cst = arith.constant dense<0.000000e+00> : vector<16x128xf32>
    %7 = tpu.matmul %5, %6, %cst {dimension_numbers = #tpu.dot_dimension_numbers<[1], [0], [0], [1], [0, 0, 1, 1], [], []>} : vector<16x128xbf16>, vector<128x128xbf16>, vector<16x128xf32> -> vector<16x128xf32>
    %8 = arith.addf %3, %7 : vector<16x128xf32>
    %c0_6 = arith.constant 0 : index
    %c0_7 = arith.constant 0 : index
    %9 = vector.load %arg5[%c0_6, %c0_7] : memref<16x128xf32, #tpu.memory_space<vmem>>, vector<16x128xf32>
    tpu.vector_store %arg5[%c0_6, %c0_7], %8 {strides = array<i32>} : memref<16x128xf32, #tpu.memory_space<vmem>>, vector<16x128xf32>,
    %c0_i32_8 = arith.constant 0 : i32
    %10 = arith.cmpi eq, %arg1, %c0_i32_8 : i32
    %11 = arith.extui %10 : i1 to i32
    %c0_i32_9 = arith.constant 0 : i32
    %12 = arith.cmpi ne, %11, %c0_i32_9 : i32
    scf.if %12 {
      %c0_10 = arith.constant 0 : index
      %c0_11 = arith.constant 0 : index
      %13 = vector.load %arg5[%c0_10, %c0_11] : memref<16x128xf32, #tpu.memory_space<vmem>>, vector<16x128xf32>
      %cst_12 = arith.constant 2.000000e+00 : f32
      %14 = vector.broadcast %cst_12 : f32 to vector<16x128xf32>
      %15 = arith.mulf %14, %13 : vector<16x128xf32>
      %16 = arith.truncf %15 : vector<16x128xf32> to vector<16x128xbf16>
      %c0_13 = arith.constant 0 : index
      %c0_14 = arith.constant 0 : index
      %17 = vector.load %arg4[%c0_13, %c0_14] : memref<16x128xbf16, #tpu.memory_space<vmem>>, vector<16x128xbf16>
      tpu.vector_store %arg4[%c0_13, %c0_14], %16 {strides = array<i32>} : memref<16x128xbf16, #tpu.memory_space<vmem>>, vector<16x128xbf16>,
    } else {
    }
    return
  }
  func.func @transform_0(%arg0: i32, %arg1: i32) -> (i32, i32) {
    %c0_i32 = arith.constant 0 : i32
    return %arg0, %arg1 : i32, i32
  }
  func.func @transform_1(%arg0: i32, %arg1: i32) -> (i32, i32) {
    %c0_i32 = arith.constant 0 : i32
    %c0_i32_0 = arith.constant 0 : i32
    return %arg1, %c0_i32 : i32, i32
  }
  func.func @transform_2(%arg0: i32, %arg1: i32) -> (i32, i32) {
    %c0_i32 = arith.constant 0 : i32
    %c0_i32_0 = arith.constant 0 : i32
    return %arg0, %c0_i32 : i32, i32
  }
}

</mosaic_0001>

<llo_original>
// kernel: tpu_custom_call.1
$region0: #{tpu_custom_call.1}
  #allocation0 [shape = 'u32[]', space=smem, size = 0x4, offset = 0x4, fixed_abs, tag = 'smem constant byte address 0x4 - core index']
  #allocation1 [shape = 'u32[72,128]{1,0:T(1,128)}', space=vmem, size = 0x9000, scoped, tag = 'internal scratch']
  #allocation2 [shape = 'f32[16,128]{1,0:T(8,128)}', space=vmem, size = 0x2000, scoped, tag = 'scratch operand']
  %s0 = inlined_call_operand.hbm [shape: f32[16,128], index: 0, kind: input, shape index: {}]
  %s1 = inlined_call_operand.hbm [shape: bf16[128,128], index: 1, kind: input, shape index: {}]
  %s2 = inlined_call_operand.hbm [shape: bf16[16,128], index: 2, kind: output, shape index: {}]
  %s3 = sld [smem:[#allocation0]]
  $region34: #{tpu_custom_call.1} parent=0
    _
  %s5 = ssub.s32 1, %s3
  %s6 = scalar_select 0, %s5, %s3
  $region1: #{tpu_custom_call.1} parent=0
    #allocation3 [shape = 'u8[8192]{0}', space=vmem, size = 0x2000, scoped, tag = 'input window, operand 0, single buffered']
    #allocation4 [shape = 's32[1]{0}', space=sflag, size = 0x4, scoped, tag = 'scoped memory for tpu_custom_call.1']
    #allocation5 [shape = 's32[1]{0}', space=sflag, size = 0x4, scoped, tag = 'scoped memory for tpu_custom_call.1']
    #allocation6 [shape = 'u8[32768]{0}', space=vmem, size = 0x8000, scoped, tag = 'input window, operand 1, single buffered']
    #allocation7 [shape = 's32[1]{0}', space=sflag, size = 0x4, scoped, tag = 'scoped memory for tpu_custom_call.1']
    #allocation8 [shape = 'u8[4096]{0}', space=vmem, size = 0x1000, scoped, tag = 'output window, operand 0, single buffered']
    %7 = vsyncpa [#allocation4], 0
    %8 = vsyncpa [#allocation7], 0
    %9 = vsyncpa [#allocation5], 0
    // Predicated region
    $region2: #{tpu_custom_call.1} parent=1 // pred_check
      _
    $region3: #{tpu_custom_call.1} parent=1 // pred_check_branch
      %11 = sbr.rel (0) target = $region5
    $region4: #{tpu_custom_call.1} parent=1 // pred_region
      %13 = vsyncadd [#allocation4], 0
      %s14 = sshll.u32 %s0, 4
      %s15 = int_to_ptr.hbm [resolvable:$true] %s14
      %s16 = sshll.u32 [#allocation3], 4
      %s17 = int_to_ptr.vmem [resolvable:$true] %s16
      %22 = dma.hbm_to_vmem [thread:$0]  %s15, 256, %s17, [#allocation4], 128, 128, 8
    $region5: #{tpu_custom_call.1} parent=1 // pred_fallthru
      _
    // Predicated region
    $region6: #{tpu_custom_call.1} parent=1 // pred_check
      _
    $region7: #{tpu_custom_call.1} parent=1 // pred_check_branch
      %24 = sbr.rel (0) target = $region9
    $region8: #{tpu_custom_call.1} parent=1 // pred_region
      %26 = vsyncadd [#allocation7], 0
      %s27 = sshll.u32 %s1, 4
      %s28 = int_to_ptr.hbm [resolvable:$true] %s27
      %s29 = sshll.u32 [#allocation6], 4
      %s30 = int_to_ptr.vmem [resolvable:$true] %s29
      %35 = dma.hbm_to_vmem [thread:$0]  %s28, 1024, %s30, [#allocation7], 64, 64, 4
    $region9: #{tpu_custom_call.1} parent=1 // pred_fallthru
      _
    // Predicated region
    $region10: #{tpu_custom_call.1} parent=1 // pred_check
      _
    $region11: #{tpu_custom_call.1} parent=1 // pred_check_branch
      %37 = sbr.rel (0) target = $region13
    $region12: #{tpu_custom_call.1} parent=1 // pred_region
      %39 = dma.done [#allocation4], 256
    $region13: #{tpu_custom_call.1} parent=1 // pred_fallthru
      _
    // Predicated region
    $region14: #{tpu_custom_call.1} parent=1 // pred_check
      _
    $region15: #{tpu_custom_call.1} parent=1 // pred_check_branch
      %41 = sbr.rel (0) target = $region17
    $region16: #{tpu_custom_call.1} parent=1 // pred_region
      %43 = dma.done [#allocation7], 1024
    $region17: #{tpu_custom_call.1} parent=1 // pred_fallthru
      _
    %p44 = scmp.eq.s32.totalorder 0, 0
    // Predicated region
    $region18: #{tpu_custom_call.1} parent=1 // pred_check
      %p45 = pneg %p44
    $region19: #{tpu_custom_call.1} parent=1 // pred_check_branch
      %47 = sbr.rel (%p45) target = $region21
    $region20: #{tpu_custom_call.1} parent=1 // pred_region
      %48 = vst [vmem:[#allocation2] sm:$0xff] 0.0
      %49 = vst [vmem:[#allocation2 + $0x8] sm:$0xff] 0.0
    $region21: #{tpu_custom_call.1} parent=1 // pred_fallthru
      _
    %v50 = vld [vmem:[#allocation2] sm:$0xff]
    %v51 = vld [vmem:[#allocation2 + $0x8] sm:$0xff]
    %v52 = vld [vmem:[#allocation3] sm:$0xff]
    %v53 = vld [vmem:[#allocation3 + $0x8] sm:$0xff]
    %v54 = vpack.c.bf16 %v53, %v52
    %v55 = vld [vmem:[#allocation6] sm:$0xf]
    %v56 = vld [vmem:[#allocation6 + $0x4] sm:$0xf]
    %v57 = vld [vmem:[#allocation6 + $0x8] sm:$0xf]
    %v58 = vld [vmem:[#allocation6 + $0xc] sm:$0xf]
    %v59 = vld [vmem:[#allocation6 + $0x10] sm:$0xf]
    %v60 = vld [vmem:[#allocation6 + $0x14] sm:$0xf]
    %v61 = vld [vmem:[#allocation6 + $0x18] sm:$0xf]
    %v62 = vld [vmem:[#allocation6 + $0x1c] sm:$0xf]
    %v63 = vld [vmem:[#allocation6 + $0x20] sm:$0xf]
    %v64 = vld [vmem:[#allocation6 + $0x24] sm:$0xf]
    %v65 = vld [vmem:[#allocation6 + $0x28] sm:$0xf]
    %v66 = vld [vmem:[#allocation6 + $0x2c] sm:$0xf]
    %v67 = vld [vmem:[#allocation6 + $0x30] sm:$0xf]
    %v68 = vld [vmem:[#allocation6 + $0x34] sm:$0xf]
    %v69 = vld [vmem:[#allocation6 + $0x38] sm:$0xf]
    %v70 = vld [vmem:[#allocation6 + $0x3c] sm:$0xf]
    %v87 = vunpack.c.l.b16 %v55
    %v88 = vunpack.c.l.b16 %v56
    %v89 = vunpack.c.l.b16 %v57
    %v90 = vunpack.c.l.b16 %v58
    %v91 = vunpack.c.l.b16 %v59
    %v92 = vunpack.c.l.b16 %v60
    %v93 = vunpack.c.l.b16 %v61
    %v94 = vunpack.c.l.b16 %v62
    %v95 = vunpack.c.l.b16 %v63
    %v96 = vunpack.c.l.b16 %v64
    %v97 = vunpack.c.l.b16 %v65
    %v98 = vunpack.c.l.b16 %v66
    %v99 = vunpack.c.l.b16 %v67
    %v100 = vunpack.c.l.b16 %v68
    %v101 = vunpack.c.l.b16 %v69
    %v102 = vunpack.c.l.b16 %v70
    %v103 = vpack.c.b16 %v88, %v87
    %v104 = vpack.c.b16 %v90, %v89
    %v105 = vpack.c.b16 %v92, %v91
    %v106 = vpack.c.b16 %v94, %v93
    %v107 = vpack.c.b16 %v96, %v95
    %v108 = vpack.c.b16 %v98, %v97
    %v109 = vpack.c.b16 %v100, %v99
    %v110 = vpack.c.b16 %v102, %v101
    %119 = vmatpush.bf16.msra.mxu0 %v110
    %120 = vmatpush.bf16.msra.mxu0 %v109
    %121 = vmatpush.bf16.msra.mxu0 %v108
    %122 = vmatpush.bf16.msra.mxu0 %v107
    %123 = vmatpush.bf16.msra.mxu0 %v106
    %124 = vmatpush.bf16.msra.mxu0 %v105
    %125 = vmatpush.bf16.msra.mxu0 %v104
    %126 = vmatpush.bf16.msra.mxu0 %v103
    %127 = vmatmul.bf16.gmra.mxu0 %v54
    %v128 = vpop.f32.mrf.mxu0
    %v129 = vadd.f32 0.0, %v128
    %v130 = vpop.f32.mrf.mxu0
    %v131 = vadd.f32 0.0, %v130
    %132 = vdwg.mxu0
    %v133 = vadd.f32 %v50, %v129
    %v134 = vadd.f32 %v51, %v131
    %135 = vst [vmem:[#allocation2] sm:$0xff] %v133
    %136 = vst [vmem:[#allocation2 + $0x8] sm:$0xff] %v134
    // Predicated region
    $region22: #{tpu_custom_call.1} parent=1 // pred_check
      %p137 = pneg %p44
    $region23: #{tpu_custom_call.1} parent=1 // pred_check_branch
      %139 = sbr.rel (%p137) target = $region25
    $region24: #{tpu_custom_call.1} parent=1 // pred_region
      %v140 = vld [vmem:[#allocation2] sm:$0xff]
      %v141 = vld [vmem:[#allocation2 + $0x8] sm:$0xff]
      %v142 = vmul.f32 %v140, 2.0
      %v143 = vmul.f32 %v141, 2.0
      %v144 = vpack.c.bf16 %v142, %v142
      %v145 = vpack.c.bf16 %v143, %v143
      %146 = vst [vmem:[#allocation8] sm:$0xf] %v144
      %147 = vst [vmem:[#allocation8 + $0x4] sm:$0xf] %v145
    $region25: #{tpu_custom_call.1} parent=1 // pred_fallthru
      _
    // Predicated region
    $region26: #{tpu_custom_call.1} parent=1 // pred_check
      _
    $region27: #{tpu_custom_call.1} parent=1 // pred_check_branch
      %149 = sbr.rel (0) target = $region29
    $region28: #{tpu_custom_call.1} parent=1 // pred_region
      %151 = vsyncadd [#allocation5], 0
      %s152 = sshll.u32 [#allocation8], 4
      %s153 = int_to_ptr.vmem [resolvable:$true] %s152
      %s154 = sshll.u32 %s2, 4
      %s155 = int_to_ptr.hbm [resolvable:$true] %s154
      %160 = dma.vmem_to_hbm [thread:$0]  %s153, 128, %s155, [#allocation5], 64, 64, 4
    $region29: #{tpu_custom_call.1} parent=1 // pred_fallthru
      _
    // Predicated region
    $region30: #{tpu_custom_call.1} parent=1 // pred_check
      _
    $region31: #{tpu_custom_call.1} parent=1 // pred_check_branch
      %162 = sbr.rel (0) target = $region33
    $region32: #{tpu_custom_call.1} parent=1 // pred_region
      %164 = dma.done [#allocation5], 128
    $region33: #{tpu_custom_call.1} parent=1 // pred_fallthru
      _
    %165 = vsyncpa [#allocation4], 1
    %166 = vsyncpa [#allocation7], 1
    %167 = vsyncpa [#allocation5], 1

</llo_original>
